<compile_context>
chip_gen: v6e
topology: v6e:2x2x1
jax: 0.10.0
libtpu: 0.0.40
codegen_flags: <defaults>
</compile_context>

<pallas_src>
import math

import numpy as np
import jax
import jax.numpy as jnp
from jax.experimental import pallas as pl
from jax.experimental.pallas import tpu as pltpu


KW = 5          # kernel_size
STRIDE = 2
PAD = 2
OUT_PAD = 1
SIGMA = 0.5


def get_kernel(kernel_width=5, sigma=0.5):
    kernel = np.zeros([kernel_width, kernel_width])
    center = (kernel_width + 1.0) / 2.0
    sigma_sq = sigma * sigma
    for i in range(1, kernel.shape[0] + 1):
        for j in range(1, kernel.shape[1] + 1):
            di = (i - center) / 2.0
            dj = (j - center) / 2.0
            kernel[i - 1][j - 1] = np.exp(-(di * di + dj * dj) / (2 * sigma_sq))
            kernel[i - 1][j - 1] = kernel[i - 1][j - 1] / (2.0 * np.pi * sigma_sq)
    kernel /= kernel.sum()
    return kernel


def _gauss_1d(kernel_width=KW, sigma=SIGMA):
    center = (kernel_width + 1.0) / 2.0
    d = (np.arange(1, kernel_width + 1) - center) / 2.0
    g = np.exp(-(d * d) / (2.0 * sigma * sigma))
    return g / g.sum()


_GN = _gauss_1d()                       # normalized 1-D Gaussian; outer(g,g)==get_kernel()
_GNF = _GN[::-1].copy()                 # flipped taps (transposed conv -> correlation)
_GAUSS_2D = get_kernel(KW, SIGMA).astype(np.float32)


def _upsample_matrix(L):
    """(L, 2L) matrix A such that y = x @ A is the 1-D ConvTranspose
    (k=5, stride=2, padding=2, output_padding=1) with the 1-D Gaussian."""
    OL = STRIDE * L
    pad_lo = KW - 1 - PAD               # = 2
    A = np.zeros((L, OL), dtype=np.float64)
    for h in range(L):
        p = pad_lo + STRIDE * h         # position of x[h] in the zero-inserted, padded line
        for a in range(KW):
            o = p - a                   # output index that multiplies tap a
            if 0 <= o < OL:
                A[h, o] += _GNF[a]
    return A.astype(np.float32)


# ----------------------------------------------------------------------------
# Kernel
# ----------------------------------------------------------------------------
def _make_kernel(TB, H, W):
    OH, OW = STRIDE * H, STRIDE * W

    def kernel(aht_ref, aw_ref, x_ref, o_ref, u_ref):
        # aht_ref (OH, H), aw_ref (W, OW): VMEM-resident constant matrices.
        # x_ref (TB*H, W): TB stacked input planes.     o_ref (TB*OH, OW).
        # u_ref (TB*OH, W): height-upsampled planes (VMEM scratch).
        aht = aht_ref[...]

        def h_up(b, carry):
            xb = x_ref[pl.ds(b * H, H), :]                                # (H, W)
            u = jnp.dot(aht, xb, preferred_element_type=jnp.float32)      # (OH, W)
            u_ref[pl.ds(b * OH, OH), :] = u.astype(u_ref.dtype)
            return carry

        if TB <= 32:
            # Small blocks: static unroll (tiny trace, best LLO scheduling).
            for b in range(TB):
                h_up(b, None)
        else:
            # Large blocks: bounded trace size and vreg live ranges.
            jax.lax.fori_loop(0, TB, h_up, None)

        # Width upsample for ALL TB planes as one stacked MXU matmul,
        # (TB*OH, W) @ (W, OW), stored with a single full-block store.
        y = jnp.dot(u_ref[...], aw_ref[...], preferred_element_type=jnp.float32)
        o_ref[...] = y.astype(o_ref.dtype)

    return kernel


# ----------------------------------------------------------------------------
# VMEM accounting / block-size selection
# ----------------------------------------------------------------------------
def _padded_bytes(rows, cols, itemsize):
    """VMEM footprint of a (rows, cols) buffer after (8, 128) tile padding."""
    return (-(-rows // 8) * 8) * (-(-cols // 128) * 128) * itemsize


def _vmem_capacity_bytes():
    try:
        return int(pltpu.get_tpu_info().vmem_capacity_bytes)
    except Exception:
        return 64 * 1024 * 1024          # conservative (v7x-sized) fallback


def _choose_tb(NC, H, W, in_isz, out_isz, c_isz, budget):
    """Pick planes-per-grid-step TB; return (TB, footprint_bytes)."""
    OH, OW = STRIDE * H, STRIDE * W
    # Keep the block's second-minor dim (TB*H) a multiple of 8 whenever the
    # block does not span the whole array (Mosaic (8,128) block constraint).
    m = 8 // math.gcd(H, 8)

    def footprint(tb):
        return (2 * _padded_bytes(tb * H, W, in_isz)        # input, double-buffered
                + 2 * _padded_bytes(tb * OH, OW, out_isz)   # output, double-buffered
                + _padded_bytes(tb * OH, W, c_isz)          # scratch (single)
                + 2 * (_padded_bytes(OH, H, c_isz)          # resident constants
                       + _padded_bytes(W, OW, c_isz)))      # (2 pipeline buffers each)

    cands = sorted(set(list(range(m, NC + 1, m)) + [NC]))
    fitting = [tb for tb in cands if footprint(tb) <= budget]
    tb = max(fitting) if fitting else min(cands)

    # v7x shards the "parallel" grid axis over 2 TensorCores: prefer an even
    # number of grid steps, but never shrink TB by more than 25% to get it.
    steps = -(-NC // tb)
    if steps > 1 and steps % 2 == 1:
        for tb2 in sorted((c for c in cands if c <= tb), reverse=True):
            if (-(-NC // tb2)) % 2 == 0 and 4 * tb2 >= 3 * tb:
                tb = tb2
                break
    return tb, footprint(tb)


# ----------------------------------------------------------------------------
# Wrapper
# ----------------------------------------------------------------------------
def gaussian_upsample(x):
    """Forward pass of `gaussian`: x (N, C, H, W) -> (N, C, 2H, 2W)."""
    N, C, H, W = x.shape
    OH, OW = STRIDE * H, STRIDE * W
    NC = N * C

    # bf16 stays bf16 on the MXU (f32 accumulation); anything else runs in f32.
    if x.dtype == jnp.bfloat16:
        cdt = jnp.bfloat16
        x_in = x
    else:
        cdt = jnp.float32
        x_in = x if x.dtype == jnp.float32 else x.astype(jnp.float32)
    out_dtype = x.dtype

    # Contiguous row-major views (free): (N,C,H,W) -> (NC*H, W); out (NC*OH, OW).
    xf = x_in.reshape(NC * H, W)

    in_isz = jnp.dtype(x_in.dtype).itemsize
    out_isz = jnp.dtype(out_dtype).itemsize
    c_isz = jnp.dtype(cdt).itemsize

    cap = _vmem_capacity_bytes()
    budget = min(48 << 20, (cap * 45) // 100)          # ~29 MiB on v7x, 48 MiB on v5e/v6e
    TB, fp = _choose_tb(NC, H, W, in_isz, out_isz, c_isz, budget)
    vmem_limit = int(min((cap * 9) // 10, max(2 * fp + (4 << 20), 24 << 20)))

    aht = jnp.asarray(_upsample_matrix(H).T, dtype=cdt)     # (OH, H)
    aw = jnp.asarray(_upsample_matrix(W), dtype=cdt)        # (W, OW)

    grid = (-(-NC // TB),)                                   # cdiv: partial tail OK
    flops = 2 * NC * OH * H * W + 2 * NC * OH * W * OW
    bytes_accessed = NC * H * W * in_isz + NC * OH * OW * out_isz

    out = pl.pallas_call(
        _make_kernel(TB, H, W),
        out_shape=jax.ShapeDtypeStruct((NC * OH, OW), out_dtype),
        grid=grid,
        in_specs=[
            # Resident constants (constant index_map -> fetched once); their
            # second pipeline buffer is accounted for in _choose_tb.
            pl.BlockSpec((OH, H), lambda i: (0, 0)),
            pl.BlockSpec((W, OW), lambda i: (0, 0)),
            pl.BlockSpec((TB * H, W), lambda i: (i, 0)),
        ],
        # NOTE: for W < 64 (OW < 128 lanes) this output block is lane-sparse and
        # stores are masked (vst.msk) -- accepted for tiny planes (see header).
        out_specs=pl.BlockSpec((TB * OH, OW), lambda i: (i, 0)),
        scratch_shapes=[pltpu.VMEM((TB * OH, W), cdt)],
        compiler_params=pltpu.CompilerParams(
            dimension_semantics=("parallel",),
            vmem_limit_bytes=vmem_limit,
        ),
        cost_estimate=pl.CostEstimate(
            flops=flops, transcendentals=0, bytes_accessed=bytes_accessed),
    )(aht, aw, xf)

    return out.reshape(N, C, OH, OW)


# ----------------------------------------------------------------------------
# Pure-JAX reference + self-test
# ----------------------------------------------------------------------------
def _reference(x):
    """Transposed conv as lhs-dilated depthwise conv (pure JAX reference)."""
    N, C, H, W = x.shape
    wf = jnp.asarray(_GAUSS_2D[::-1, ::-1].copy())[None, None]   # flipped (1,1,5,5)
    wf = jnp.tile(wf, (C, 1, 1, 1))                              # (C,1,5,5) OIHW
    pad_lo = KW - 1 - PAD
    pad_hi = KW - 1 - PAD + OUT_PAD
    return jax.lax.conv_general_dilated(
        x.astype(jnp.float32), wf,
        window_strides=(1, 1),
        padding=((pad_lo, pad_hi), (pad_lo, pad_hi)),
        lhs_dilation=(STRIDE, STRIDE),
        rhs_dilation=(1, 1),
        dimension_numbers=("NCHW", "OIHW", "NCHW"),
        feature_group_count=C)


if __name__ == "__main__":
    # sanity: separable 1-D taps reproduce the 2-D Gaussian kernel exactly
    assert np.allclose(np.outer(_GN, _GN), get_kernel(KW, SIGMA), atol=1e-12)

    key = jax.random.PRNGKey(0)

    # Small shape consistent with the module: batch=2, n_planes=4, 16x16.
    n_planes = 4
    x = jax.random.normal(key, (2, n_planes, 16, 16), dtype=jnp.float32)
    y = jax.block_until_ready(gaussian_upsample(x))
    assert y.shape == (2, n_planes, 32, 32), y.shape
    err = float(jnp.max(jnp.abs(y.astype(jnp.float32) - _reference(x))))
    assert err < 1e-5, f"max abs err {err}"

    # Non-square plane / odd plane count exercises H != W matrices and odd NC.
    x2 = jax.random.normal(jax.random.PRNGKey(0), (1, 3, 8, 24), dtype=jnp.float32)
    y2 = jax.block_until_ready(gaussian_upsample(x2))
    assert y2.shape == (1, 3, 16, 48), y2.shape
    err2 = float(jnp.max(jnp.abs(y2.astype(jnp.float32) - _reference(x2))))
    assert err2 < 1e-5, f"max abs err {err2}"

    print("KERNEL_OK")
</pallas_src>

<mosaic_0001>
module attributes {stable_mosaic.version = 11 : i64} {
  func.func @kernel(%arg0: i32, %arg1: memref<32x16xf32, #tpu.memory_space<vmem>>, %arg2: memref<16x32xf32, #tpu.memory_space<vmem>>, %arg3: memref<128x16xf32, #tpu.memory_space<vmem>>, %arg4: memref<256x32xf32, #tpu.memory_space<vmem>>, %arg5: memref<256x16xf32, #tpu.memory_space<vmem>>) attributes {dimension_semantics = [#tpu.dimension_semantics<parallel>], iteration_bounds = array<i64: 1>, scalar_prefetch = 0 : i64, scratch_operands = 1 : i64, tpu.core_type = #tpu.core_type<tc>, window_params = [{pipeline_mode = #tpu.pipeline_mode<synchronous>, transform_indices = @transform_0, window_bounds = array<i64: 32, 16>}, {pipeline_mode = #tpu.pipeline_mode<synchronous>, transform_indices = @transform_1, window_bounds = array<i64: 16, 32>}, {transform_indices = @transform_2, window_bounds = array<i64: 128, 16>}, {transform_indices = @transform_3, window_bounds = array<i64: 256, 32>}]} {
    %c0 = arith.constant 0 : index
    %c0_0 = arith.constant 0 : index
    %0 = vector.load %arg1[%c0, %c0_0] : memref<32x16xf32, #tpu.memory_space<vmem>>, vector<32x16xf32>
    %c0_1 = arith.constant 0 : index
    %c0_2 = arith.constant 0 : index
    %1 = vector.load %arg3[%c0_1, %c0_2] : memref<128x16xf32, #tpu.memory_space<vmem>>, vector<16x16xf32>
    %cst = arith.constant dense<0.000000e+00> : vector<32x16xf32>
    %2 = tpu.matmul %0, %1, %cst {dimension_numbers = #tpu.dot_dimension_numbers<[1], [0], [0], [1], [0, 0, 1, 1], [], []>} : vector<32x16xf32>, vector<16x16xf32>, vector<32x16xf32> -> vector<32x16xf32>
    %c0_3 = arith.constant 0 : index
    %c0_4 = arith.constant 0 : index
    %3 = vector.load %arg5[%c0_3, %c0_4] : memref<256x16xf32, #tpu.memory_space<vmem>>, vector<32x16xf32>
    tpu.vector_store %arg5[%c0_3, %c0_4], %2 {strides = array<i32>} : memref<256x16xf32, #tpu.memory_space<vmem>>, vector<32x16xf32>,
    %c16 = arith.constant 16 : index
    %c0_5 = arith.constant 0 : index
    %4 = vector.load %arg3[%c16, %c0_5] : memref<128x16xf32, #tpu.memory_space<vmem>>, vector<16x16xf32>
    %cst_6 = arith.constant dense<0.000000e+00> : vector<32x16xf32>
    %5 = tpu.matmul %0, %4, %cst_6 {dimension_numbers = #tpu.dot_dimension_numbers<[1], [0], [0], [1], [0, 0, 1, 1], [], []>} : vector<32x16xf32>, vector<16x16xf32>, vector<32x16xf32> -> vector<32x16xf32>
    %c32 = arith.constant 32 : index
    %c0_7 = arith.constant 0 : index
    %6 = vector.load %arg5[%c32, %c0_7] : memref<256x16xf32, #tpu.memory_space<vmem>>, vector<32x16xf32>
    tpu.vector_store %arg5[%c32, %c0_7], %5 {strides = array<i32>} : memref<256x16xf32, #tpu.memory_space<vmem>>, vector<32x16xf32>,
    %c32_8 = arith.constant 32 : index
    %c0_9 = arith.constant 0 : index
    %7 = vector.load %arg3[%c32_8, %c0_9] : memref<128x16xf32, #tpu.memory_space<vmem>>, vector<16x16xf32>
    %cst_10 = arith.constant dense<0.000000e+00> : vector<32x16xf32>
    %8 = tpu.matmul %0, %7, %cst_10 {dimension_numbers = #tpu.dot_dimension_numbers<[1], [0], [0], [1], [0, 0, 1, 1], [], []>} : vector<32x16xf32>, vector<16x16xf32>, vector<32x16xf32> -> vector<32x16xf32>
    %c64 = arith.constant 64 : index
    %c0_11 = arith.constant 0 : index
    %9 = vector.load %arg5[%c64, %c0_11] : memref<256x16xf32, #tpu.memory_space<vmem>>, vector<32x16xf32>
    tpu.vector_store %arg5[%c64, %c0_11], %8 {strides = array<i32>} : memref<256x16xf32, #tpu.memory_space<vmem>>, vector<32x16xf32>,
    %c48 = arith.constant 48 : index
    %c0_12 = arith.constant 0 : index
    %10 = vector.load %arg3[%c48, %c0_12] : memref<128x16xf32, #tpu.memory_space<vmem>>, vector<16x16xf32>
    %cst_13 = arith.constant dense<0.000000e+00> : vector<32x16xf32>
    %11 = tpu.matmul %0, %10, %cst_13 {dimension_numbers = #tpu.dot_dimension_numbers<[1], [0], [0], [1], [0, 0, 1, 1], [], []>} : vector<32x16xf32>, vector<16x16xf32>, vector<32x16xf32> -> vector<32x16xf32>
    %c96 = arith.constant 96 : index
    %c0_14 = arith.constant 0 : index
    %12 = vector.load %arg5[%c96, %c0_14] : memref<256x16xf32, #tpu.memory_space<vmem>>, vector<32x16xf32>
    tpu.vector_store %arg5[%c96, %c0_14], %11 {strides = array<i32>} : memref<256x16xf32, #tpu.memory_space<vmem>>, vector<32x16xf32>,
    %c64_15 = arith.constant 64 : index
    %c0_16 = arith.constant 0 : index
    %13 = vector.load %arg3[%c64_15, %c0_16] : memref<128x16xf32, #tpu.memory_space<vmem>>, vector<16x16xf32>
    %cst_17 = arith.constant dense<0.000000e+00> : vector<32x16xf32>
    %14 = tpu.matmul %0, %13, %cst_17 {dimension_numbers = #tpu.dot_dimension_numbers<[1], [0], [0], [1], [0, 0, 1, 1], [], []>} : vector<32x16xf32>, vector<16x16xf32>, vector<32x16xf32> -> vector<32x16xf32>
    %c128 = arith.constant 128 : index
    %c0_18 = arith.constant 0 : index
    %15 = vector.load %arg5[%c128, %c0_18] : memref<256x16xf32, #tpu.memory_space<vmem>>, vector<32x16xf32>
    tpu.vector_store %arg5[%c128, %c0_18], %14 {strides = array<i32>} : memref<256x16xf32, #tpu.memory_space<vmem>>, vector<32x16xf32>,
    %c80 = arith.constant 80 : index
    %c0_19 = arith.constant 0 : index
    %16 = vector.load %arg3[%c80, %c0_19] : memref<128x16xf32, #tpu.memory_space<vmem>>, vector<16x16xf32>
    %cst_20 = arith.constant dense<0.000000e+00> : vector<32x16xf32>
    %17 = tpu.matmul %0, %16, %cst_20 {dimension_numbers = #tpu.dot_dimension_numbers<[1], [0], [0], [1], [0, 0, 1, 1], [], []>} : vector<32x16xf32>, vector<16x16xf32>, vector<32x16xf32> -> vector<32x16xf32>
    %c160 = arith.constant 160 : index
    %c0_21 = arith.constant 0 : index
    %18 = vector.load %arg5[%c160, %c0_21] : memref<256x16xf32, #tpu.memory_space<vmem>>, vector<32x16xf32>
    tpu.vector_store %arg5[%c160, %c0_21], %17 {strides = array<i32>} : memref<256x16xf32, #tpu.memory_space<vmem>>, vector<32x16xf32>,
    %c96_22 = arith.constant 96 : index
    %c0_23 = arith.constant 0 : index
    %19 = vector.load %arg3[%c96_22, %c0_23] : memref<128x16xf32, #tpu.memory_space<vmem>>, vector<16x16xf32>
    %cst_24 = arith.constant dense<0.000000e+00> : vector<32x16xf32>
    %20 = tpu.matmul %0, %19, %cst_24 {dimension_numbers = #tpu.dot_dimension_numbers<[1], [0], [0], [1], [0, 0, 1, 1], [], []>} : vector<32x16xf32>, vector<16x16xf32>, vector<32x16xf32> -> vector<32x16xf32>
    %c192 = arith.constant 192 : index
    %c0_25 = arith.constant 0 : index
    %21 = vector.load %arg5[%c192, %c0_25] : memref<256x16xf32, #tpu.memory_space<vmem>>, vector<32x16xf32>
    tpu.vector_store %arg5[%c192, %c0_25], %20 {strides = array<i32>} : memref<256x16xf32, #tpu.memory_space<vmem>>, vector<32x16xf32>,
    %c112 = arith.constant 112 : index
    %c0_26 = arith.constant 0 : index
    %22 = vector.load %arg3[%c112, %c0_26] : memref<128x16xf32, #tpu.memory_space<vmem>>, vector<16x16xf32>
    %cst_27 = arith.constant dense<0.000000e+00> : vector<32x16xf32>
    %23 = tpu.matmul %0, %22, %cst_27 {dimension_numbers = #tpu.dot_dimension_numbers<[1], [0], [0], [1], [0, 0, 1, 1], [], []>} : vector<32x16xf32>, vector<16x16xf32>, vector<32x16xf32> -> vector<32x16xf32>
    %c224 = arith.constant 224 : index
    %c0_28 = arith.constant 0 : index
    %24 = vector.load %arg5[%c224, %c0_28] : memref<256x16xf32, #tpu.memory_space<vmem>>, vector<32x16xf32>
    tpu.vector_store %arg5[%c224, %c0_28], %23 {strides = array<i32>} : memref<256x16xf32, #tpu.memory_space<vmem>>, vector<32x16xf32>,
    %c0_29 = arith.constant 0 : index
    %c0_30 = arith.constant 0 : index
    %25 = vector.load %arg5[%c0_29, %c0_30] : memref<256x16xf32, #tpu.memory_space<vmem>>, vector<256x16xf32>
    %c0_31 = arith.constant 0 : index
    %c0_32 = arith.constant 0 : index
    %26 = vector.load %arg2[%c0_31, %c0_32] : memref<16x32xf32, #tpu.memory_space<vmem>>, vector<16x32xf32>
    %cst_33 = arith.constant dense<0.000000e+00> : vector<256x32xf32>
    %27 = tpu.matmul %25, %26, %cst_33 {dimension_numbers = #tpu.dot_dimension_numbers<[1], [0], [0], [1], [0, 0, 1, 1], [], []>} : vector<256x16xf32>, vector<16x32xf32>, vector<256x32xf32> -> vector<256x32xf32>
    %c0_34 = arith.constant 0 : index
    %c0_35 = arith.constant 0 : index
    %28 = vector.load %arg4[%c0_34, %c0_35] : memref<256x32xf32, #tpu.memory_space<vmem>>, vector<256x32xf32>
    tpu.vector_store %arg4[%c0_34, %c0_35], %27 {strides = array<i32>} : memref<256x32xf32, #tpu.memory_space<vmem>>, vector<256x32xf32>,
    return
  }
  func.func @transform_0(%arg0: i32) -> (i32, i32) {
    %c0_i32 = arith.constant 0 : i32
    %c0_i32_0 = arith.constant 0 : i32
    %c0_i32_1 = arith.constant 0 : i32
    return %c0_i32, %c0_i32_0 : i32, i32
  }
  func.func @transform_1(%arg0: i32) -> (i32, i32) {
    %c0_i32 = arith.constant 0 : i32
    %c0_i32_0 = arith.constant 0 : i32
    %c0_i32_1 = arith.constant 0 : i32
    return %c0_i32, %c0_i32_0 : i32, i32
  }
  func.func @transform_2(%arg0: i32) -> (i32, i32) {
    %c0_i32 = arith.constant 0 : i32
    %c0_i32_0 = arith.constant 0 : i32
    return %arg0, %c0_i32 : i32, i32
  }
  func.func @transform_3(%arg0: i32) -> (i32, i32) {
    %c0_i32 = arith.constant 0 : i32
    %c0_i32_0 = arith.constant 0 : i32
    return %arg0, %c0_i32 : i32, i32
  }
}

</mosaic_0001>

<llo_original>
// kernel: tpu_custom_call.1
$region0: #{tpu_custom_call.1}
  #allocation0 [shape = 'u32[]', space=smem, size = 0x4, offset = 0x4, fixed_abs, tag = 'smem constant byte address 0x4 - core index']
  #allocation1 [shape = 'u32[144,128]{1,0:T(1,128)}', space=vmem, size = 0x12000, scoped, tag = 'internal scratch']
  #allocation2 [shape = 'f32[256,16]{1,0:T(8,128)}', space=vmem, size = 0x20000, scoped, tag = 'scratch operand']
  %s0 = inlined_call_operand.vmem [shape: f32[32,16], index: 0, kind: input, shape index: {}]
  %s1 = inlined_call_operand.vmem [shape: f32[16,32], index: 1, kind: input, shape index: {}]
  %s2 = inlined_call_operand.vmem [shape: f32[128,16], index: 2, kind: input, shape index: {}]
  %s3 = inlined_call_operand.vmem [shape: f32[256,32], index: 3, kind: output, shape index: {}]
  %s4 = sld [smem:[#allocation0]]
  $region22: #{tpu_custom_call.1} parent=0
    _
  %s6 = ssub.s32 1, %s4
  %s7 = scalar_select 0, %s6, %s4
  // Predicated region
  $region2: #{tpu_custom_call.1} parent=0 // pred_check
    _
  $region3: #{tpu_custom_call.1} parent=0 // pred_check_branch
    %9 = sbr.rel (0) target = $region5
  $region4: #{tpu_custom_call.1} parent=0 // pred_region
    _
  $region5: #{tpu_custom_call.1} parent=0 // pred_fallthru
    _
  // Predicated region
  $region6: #{tpu_custom_call.1} parent=0 // pred_check
    _
  $region7: #{tpu_custom_call.1} parent=0 // pred_check_branch
    %11 = sbr.rel (0) target = $region9
  $region8: #{tpu_custom_call.1} parent=0 // pred_region
    _
  $region9: #{tpu_custom_call.1} parent=0 // pred_fallthru
    _
  // Predicated region
  $region10: #{tpu_custom_call.1} parent=0 // pred_check
    _
  $region11: #{tpu_custom_call.1} parent=0 // pred_check_branch
    %13 = sbr.rel (0) target = $region13
  $region12: #{tpu_custom_call.1} parent=0 // pred_region
    _
  $region13: #{tpu_custom_call.1} parent=0 // pred_fallthru
    _
  %v14 = vld [vmem:[%s0] sm:$0xff]
  %v15 = vld [vmem:[%s0 + $0x8] sm:$0xff]
  %v16 = vld [vmem:[%s0 + $0x10] sm:$0xff]
  %v17 = vld [vmem:[%s0 + $0x18] sm:$0xff]
  %v18 = vld [vmem:[%s2] sm:$0xff]
  %v19 = vld [vmem:[%s2 + $0x8] sm:$0xff]
  %vm20 = vcmask 130048
  %v22 = vsel %vm20, %v14, 0
  %v25 = vsel %vm20, %v15, 0
  %v28 = vsel %vm20, %v16, 0
  %v31 = vsel %vm20, %v17, 0
  %33 = vmatprep.subr.mxu0 0.0
  %34 = vmatpush1.msra.mxu0 0.0
  %35 = vmatprep.subr.mxu0 0.0
  %36 = vmatpush1.msra.mxu0 0.0
  %37 = vmatprep.subr.mxu0 0.0
  %38 = vmatpush1.msra.mxu0 0.0
  %39 = vmatprep.subr.mxu0 0.0
  %40 = vmatpush1.msra.mxu0 0.0
  %41 = vmatprep.subr.mxu0 0.0
  %42 = vmatpush1.msra.mxu0 0.0
  %43 = vmatprep.subr.mxu0 0.0
  %44 = vmatpush1.msra.mxu0 0.0
  %45 = vmatprep.subr.mxu0 0.0
  %46 = vmatpush1.msra.mxu0 0.0
  %47 = vmatprep.subr.mxu0 0.0
  %48 = vmatpush1.msra.mxu0 0.0
  %49 = vmatprep.subr.mxu0 0.0
  %50 = vmatpush1.msra.mxu0 0.0
  %51 = vmatprep.subr.mxu0 0.0
  %52 = vmatpush1.msra.mxu0 0.0
  %53 = vmatprep.subr.mxu0 0.0
  %54 = vmatpush1.msra.mxu0 0.0
  %55 = vmatprep.subr.mxu0 0.0
  %56 = vmatpush1.msra.mxu0 0.0
  %57 = vmatprep.subr.mxu0 0.0
  %58 = vmatpush1.msra.mxu0 0.0
  %59 = vmatprep.subr.mxu0 0.0
  %60 = vmatpush1.msra.mxu0 0.0
  %61 = vmatprep.subr.mxu0 0.0
  %62 = vmatpush1.msra.mxu0 %v19
  %63 = vmatprep.subr.mxu0 0.0
  %64 = vmatpush1.msra.mxu0 %v18
  %65 = vmatprep.subr.mxu0 0.0
  %66 = vmatpush2.msra.mxu0 0.0
  %67 = vmatprep.subr.mxu0 0.0
  %68 = vmatpush2.msra.mxu0 0.0
  %69 = vmatprep.subr.mxu0 0.0
  %70 = vmatpush2.msra.mxu0 0.0
  %71 = vmatprep.subr.mxu0 0.0
  %72 = vmatpush2.msra.mxu0 0.0
  %73 = vmatprep.subr.mxu0 0.0
  %74 = vmatpush2.msra.mxu0 0.0
  %75 = vmatprep.subr.mxu0 0.0
  %76 = vmatpush2.msra.mxu0 0.0
  %77 = vmatprep.subr.mxu0 0.0
  %78 = vmatpush2.msra.mxu0 0.0
  %79 = vmatprep.subr.mxu0 0.0
  %80 = vmatpush2.msra.mxu0 0.0
  %81 = vmatprep.subr.mxu0 0.0
  %82 = vmatpush2.msra.mxu0 0.0
  %83 = vmatprep.subr.mxu0 0.0
  %84 = vmatpush2.msra.mxu0 0.0
  %85 = vmatprep.subr.mxu0 0.0
  %86 = vmatpush2.msra.mxu0 0.0
  %87 = vmatprep.subr.mxu0 0.0
  %88 = vmatpush2.msra.mxu0 0.0
  %89 = vmatprep.subr.mxu0 0.0
  %90 = vmatpush2.msra.mxu0 0.0
  %91 = vmatprep.subr.mxu0 0.0
  %92 = vmatpush2.msra.mxu0 0.0
  %93 = vmatprep.subr.mxu0 0.0
  %94 = vmatpush2.msra.mxu0 0.0
  %95 = vmatprep.subr.mxu0 0.0
  %96 = vmatpush2.msra.mxu0 0.0
  %97 = vmatprep.mubr.f32.mxu0 0.0
  %98 = vmatmul.mubr.f32.gmra.mxu0 %v22
  %v99 = vpop.f32.mrf.mxu0
  %v100 = vadd.f32 0.0, %v99
  %v101 = vpop.f32.mrf.mxu0
  %102 = vmatprep.mubr.f32.mxu0 0.0
  %103 = vmatmul.mubr.f32.gmra.mxu0 %v25
  %v104 = vpop.f32.mrf.mxu0
  %v105 = vadd.f32 0.0, %v104
  %v106 = vpop.f32.mrf.mxu0
  %107 = vmatprep.mubr.f32.mxu0 0.0
  %108 = vmatmul.mubr.f32.gmra.mxu0 %v28
  %v109 = vpop.f32.mrf.mxu0
  %v110 = vadd.f32 0.0, %v109
  %v111 = vpop.f32.mrf.mxu0
  %112 = vmatprep.mubr.f32.mxu0 0.0
  %113 = vmatmul.mubr.f32.gmra.mxu0 %v31
  %v114 = vpop.f32.mrf.mxu0
  %v115 = vadd.f32 0.0, %v114
  %v116 = vpop.f32.mrf.mxu0
  %117 = vdwg.mxu0
  %118 = vst.msk [vmem:[#allocation2] sm:$0xff] %vm20, %v100
  %119 = vst.msk [vmem:[#allocation2 + $0x8] sm:$0xff] %vm20, %v105
  %120 = vst.msk [vmem:[#allocation2 + $0x10] sm:$0xff] %vm20, %v110
  %121 = vst.msk [vmem:[#allocation2 + $0x18] sm:$0xff] %vm20, %v115
  %v122 = vld [vmem:[%s2 + $0x10] sm:$0xff]
  %v123 = vld [vmem:[%s2 + $0x18] sm:$0xff]
  %124 = vmatprep.subr.mxu0 0.0
  %125 = vmatpush1.msra.mxu0 0.0
  %126 = vmatprep.subr.mxu0 0.0
  %127 = vmatpush1.msra.mxu0 0.0
  %128 = vmatprep.subr.mxu0 0.0
  %129 = vmatpush1.msra.mxu0 0.0
  %130 = vmatprep.subr.mxu0 0.0
  %131 = vmatpush1.msra.mxu0 0.0
  %132 = vmatprep.subr.mxu0 0.0
  %133 = vmatpush1.msra.mxu0 0.0
  %134 = vmatprep.subr.mxu0 0.0
  %135 = vmatpush1.msra.mxu0 0.0
  %136 = vmatprep.subr.mxu0 0.0
  %137 = vmatpush1.msra.mxu0 0.0
  %138 = vmatprep.subr.mxu0 0.0
  %139 = vmatpush1.msra.mxu0 0.0
  %140 = vmatprep.subr.mxu0 0.0
  %141 = vmatpush1.msra.mxu0 0.0
  %142 = vmatprep.subr.mxu0 0.0
  %143 = vmatpush1.msra.mxu0 0.0
  %144 = vmatprep.subr.mxu0 0.0
  %145 = vmatpush1.msra.mxu0 0.0
  %146 = vmatprep.subr.mxu0 0.0
  %147 = vmatpush1.msra.mxu0 0.0
  %148 = vmatprep.subr.mxu0 0.0
  %149 = vmatpush1.msra.mxu0 0.0
  %150 = vmatprep.subr.mxu0 0.0
  %151 = vmatpush1.msra.mxu0 0.0
  %152 = vmatprep.subr.mxu0 0.0
  %153 = vmatpush1.msra.mxu0 %v123
  %154 = vmatprep.subr.mxu0 0.0
  %155 = vmatpush1.msra.mxu0 %v122
  %156 = vmatprep.subr.mxu0 0.0
  %157 = vmatpush2.msra.mxu0 0.0
  %158 = vmatprep.subr.mxu0 0.0
  %159 = vmatpush2.msra.mxu0 0.0
  %160 = vmatprep.subr.mxu0 0.0
  %161 = vmatpush2.msra.mxu0 0.0
  %162 = vmatprep.subr.mxu0 0.0
  %163 = vmatpush2.msra.mxu0 0.0
  %164 = vmatprep.subr.mxu0 0.0
  %165 = vmatpush2.msra.mxu0 0.0
  %166 = vmatprep.subr.mxu0 0.0
  %167 = vmatpush2.msra.mxu0 0.0
  %168 = vmatprep.subr.mxu0 0.0
  %169 = vmatpush2.msra.mxu0 0.0
  %170 = vmatprep.subr.mxu0 0.0
  %171 = vmatpush2.msra.mxu0 0.0
  %172 = vmatprep.subr.mxu0 0.0
  %173 = vmatpush2.msra.mxu0 0.0
  %174 = vmatprep.subr.mxu0 0.0
  %175 = vmatpush2.msra.mxu0 0.0
  %176 = vmatprep.subr.mxu0 0.0
  %177 = vmatpush2.msra.mxu0 0.0
  %178 = vmatprep.subr.mxu0 0.0
  %179 = vmatpush2.msra.mxu0 0.0
  %180 = vmatprep.subr.mxu0 0.0
  %181 = vmatpush2.msra.mxu0 0.0
  %182 = vmatprep.subr.mxu0 0.0
  %183 = vmatpush2.msra.mxu0 0.0
  %184 = vmatprep.subr.mxu0 0.0
  %185 = vmatpush2.msra.mxu0 0.0
  %186 = vmatprep.subr.mxu0 0.0
  %187 = vmatpush2.msra.mxu0 0.0
  %188 = vmatprep.mubr.f32.mxu0 0.0
  %189 = vmatmul.mubr.f32.gmra.mxu0 %v22
  %v190 = vpop.f32.mrf.mxu0
  %v191 = vadd.f32 0.0, %v190
  %v192 = vpop.f32.mrf.mxu0
  %193 = vmatprep.mubr.f32.mxu0 0.0
  %194 = vmatmul.mubr.f32.gmra.mxu0 %v25
  %v195 = vpop.f32.mrf.mxu0
  %v196 = vadd.f32 0.0, %v195
  %v197 = vpop.f32.mrf.mxu0
  %198 = vmatprep.mubr.f32.mxu0 0.0
  %199 = vmatmul.mubr.f32.gmra.mxu0 %v28
  %v200 = vpop.f32.mrf.mxu0
  %v201 = vadd.f32 0.0, %v200
  %v202 = vpop.f32.mrf.mxu0
  %203 = vmatprep.mubr.f32.mxu0 0.0
  %204 = vmatmul.mubr.f32.gmra.mxu0 %v31
  %v205 = vpop.f32.mrf.mxu0
  %v206 = vadd.f32 0.0, %v205
  %v207 = vpop.f32.mrf.mxu0
  %208 = vdwg.mxu0
  %209 = vst.msk [vmem:[#allocation2 + $0x20] sm:$0xff] %vm20, %v191
  %210 = vst.msk [vmem:[#allocation2 + $0x28] sm:$0xff] %vm20, %v196
  %211 = vst.msk [vmem:[#allocation2 + $0x30] sm:$0xff] %vm20, %v201
  %212 = vst.msk [vmem:[#allocation2 + $0x38] sm:$0xff] %vm20, %v206
  %v213 = vld [vmem:[%s2 + $0x20] sm:$0xff]
  %v214 = vld [vmem:[%s2 + $0x28] sm:$0xff]
  %215 = vmatprep.subr.mxu0 0.0
  %216 = vmatpush1.msra.mxu0 0.0
  %217 = vmatprep.subr.mxu0 0.0
  %218 = vmatpush1.msra.mxu0 0.0
  %219 = vmatprep.subr.mxu0 0.0
  %220 = vmatpush1.msra.mxu0 0.0
  %221 = vmatprep.subr.mxu0 0.0
  %222 = vmatpush1.msra.mxu0 0.0
  %223 = vmatprep.subr.mxu0 0.0
  %224 = vmatpush1.msra.mxu0 0.0
  %225 = vmatprep.subr.mxu0 0.0
  %226 = vmatpush1.msra.mxu0 0.0
  %227 = vmatprep.subr.mxu0 0.0
  %228 = vmatpush1.msra.mxu0 0.0
  %229 = vmatprep.subr.mxu0 0.0
  %230 = vmatpush1.msra.mxu0 0.0
  %231 = vmatprep.subr.mxu0 0.0
  %232 = vmatpush1.msra.mxu0 0.0
  %233 = vmatprep.subr.mxu0 0.0
  %234 = vmatpush1.msra.mxu0 0.0
  %235 = vmatprep.subr.mxu0 0.0
  %236 = vmatpush1.msra.mxu0 0.0
  %237 = vmatprep.subr.mxu0 0.0
  %238 = vmatpush1.msra.mxu0 0.0
  %239 = vmatprep.subr.mxu0 0.0
  %240 = vmatpush1.msra.mxu0 0.0
  %241 = vmatprep.subr.mxu0 0.0
  %242 = vmatpush1.msra.mxu0 0.0
  %243 = vmatprep.subr.mxu0 0.0
  %244 = vmatpush1.msra.mxu0 %v214
  %245 = vmatprep.subr.mxu0 0.0
  %246 = vmatpush1.msra.mxu0 %v213
  %247 = vmatprep.subr.mxu0 0.0
  %248 = vmatpush2.msra.mxu0 0.0
  %249 = vmatprep.subr.mxu0 0.0
  %250 = vmatpush2.msra.mxu0 0.0
  %251 = vmatprep.subr.mxu0 0.0
  %252 = vmatpush2.msra.mxu0 0.0
  %253 = vmatprep.subr.mxu0 0.0
  %254 = vmatpush2.msra.mxu0 0.0
  %255 = vmatprep.subr.mxu0 0.0
  %256 = vmatpush2.msra.mxu0 0.0
  %257 = vmatprep.subr.mxu0 0.0
  %258 = vmatpush2.msra.mxu0 0.0
  %259 = vmatprep.subr.mxu0 0.0
  %260 = vmatpush2.msra.mxu0 0.0
  %261 = vmatprep.subr.mxu0 0.0
  %262 = vmatpush2.msra.mxu0 0.0
  %263 = vmatprep.subr.mxu0 0.0
  %264 = vmatpush2.msra.mxu0 0.0
  %265 = vmatprep.subr.mxu0 0.0
  %266 = vmatpush2.msra.mxu0 0.0
  %267 = vmatprep.subr.mxu0 0.0
  %268 = vmatpush2.msra.mxu0 0.0
  %269 = vmatprep.subr.mxu0 0.0
  %270 = vmatpush2.msra.mxu0 0.0
  %271 = vmatprep.subr.mxu0 0.0
  %272 = vmatpush2.msra.mxu0 0.0
  %273 = vmatprep.subr.mxu0 0.0
  %274 = vmatpush2.msra.mxu0 0.0
  %275 = vmatprep.subr.mxu0 0.0
  %276 = vmatpush2.msra.mxu0 0.0
  %277 = vmatprep.subr.mxu0 0.0
  %278 = vmatpush2.msra.mxu0 0.0
  %279 = vmatprep.mubr.f32.mxu0 0.0
  %280 = vmatmul.mubr.f32.gmra.mxu0 %v22
  %v281 = vpop.f32.mrf.mxu0
  %v282 = vadd.f32 0.0, %v281
  %v283 = vpop.f32.mrf.mxu0
  %284 = vmatprep.mubr.f32.mxu0 0.0
  %285 = vmatmul.mubr.f32.gmra.mxu0 %v25
  %v286 = vpop.f32.mrf.mxu0
  %v287 = vadd.f32 0.0, %v286
  %v288 = vpop.f32.mrf.mxu0
  %289 = vmatprep.mubr.f32.mxu0 0.0
  %290 = vmatmul.mubr.f32.gmra.mxu0 %v28
  %v291 = vpop.f32.mrf.mxu0
  %v292 = vadd.f32 0.0, %v291
  %v293 = vpop.f32.mrf.mxu0
  %294 = vmatprep.mubr.f32.mxu0 0.0
  %295 = vmatmul.mubr.f32.gmra.mxu0 %v31
  %v296 = vpop.f32.mrf.mxu0
  %v297 = vadd.f32 0.0, %v296
  %v298 = vpop.f32.mrf.mxu0
  %299 = vdwg.mxu0
  %300 = vst.msk [vmem:[#allocation2 + $0x40] sm:$0xff] %vm20, %v282
  %301 = vst.msk [vmem:[#allocation2 + $0x48] sm:$0xff] %vm20, %v287
  %302 = vst.msk [vmem:[#allocation2 + $0x50] sm:$0xff] %vm20, %v292
  %303 = vst.msk [vmem:[#allocation2 + $0x58] sm:$0xff] %vm20, %v297
  %v304 = vld [vmem:[%s2 + $0x30] sm:$0xff]
  %v305 = vld [vmem:[%s2 + $0x38] sm:$0xff]
  %306 = vmatprep.subr.mxu0 0.0
  %307 = vmatpush1.msra.mxu0 0.0
  %308 = vmatprep.subr.mxu0 0.0
  %309 = vmatpush1.msra.mxu0 0.0
  %310 = vmatprep.subr.mxu0 0.0
  %311 = vmatpush1.msra.mxu0 0.0
  %312 = vmatprep.subr.mxu0 0.0
  %313 = vmatpush1.msra.mxu0 0.0
  %314 = vmatprep.subr.mxu0 0.0
  %315 = vmatpush1.msra.mxu0 0.0
  %316 = vmatprep.subr.mxu0 0.0
  %317 = vmatpush1.msra.mxu0 0.0
  %318 = vmatprep.subr.mxu0 0.0
  %319 = vmatpush1.msra.mxu0 0.0
  %320 = vmatprep.subr.mxu0 0.0
  %321 = vmatpush1.msra.mxu0 0.0
  %322 = vmatprep.subr.mxu0 0.0
  %323 = vmatpush1.msra.mxu0 0.0
  %324 = vmatprep.subr.mxu0 0.0
  %325 = vmatpush1.msra.mxu0 0.0
  %326 = vmatprep.subr.mxu0 0.0
  %327 = vmatpush1.msra.mxu0 0.0
  %328 = vmatprep.subr.mxu0 0.0
  %329 = vmatpush1.msra.mxu0 0.0
  %330 = vmatprep.subr.mxu0 0.0
  %331 = vmatpush1.msra.mxu0 0.0
  %332 = vmatprep.subr.mxu0 0.0
  %333 = vmatpush1.msra.mxu0 0.0
  %334 = vmatprep.subr.mxu0 0.0
  %335 = vmatpush1.msra.mxu0 %v305
  %336 = vmatprep.subr.mxu0 0.0
  %337 = vmatpush1.msra.mxu0 %v304
  %338 = vmatprep.subr.mxu0 0.0
  %339 = vmatpush2.msra.mxu0 0.0
  %340 = vmatprep.subr.mxu0 0.0
  %341 = vmatpush2.msra.mxu0 0.0
  %342 = vmatprep.subr.mxu0 0.0
  %343 = vmatpush2.msra.mxu0 0.0
  %344 = vmatprep.subr.mxu0 0.0
  %345 = vmatpush2.msra.mxu0 0.0
  %346 = vmatprep.subr.mxu0 0.0
  %347 = vmatpush2.msra.mxu0 0.0
  %348 = vmatprep.subr.mxu0 0.0
  %349 = vmatpush2.msra.mxu0 0.0
  %350 = vmatprep.subr.mxu0 0.0
  %351 = vmatpush2.msra.mxu0 0.0
  %352 = vmatprep.subr.mxu0 0.0
  %353 = vmatpush2.msra.mxu0 0.0
  %354 = vmatprep.subr.mxu0 0.0
  %355 = vmatpush2.msra.mxu0 0.0
  %356 = vmatprep.subr.mxu0 0.0
  %357 = vmatpush2.msra.mxu0 0.0
  %358 = vmatprep.subr.mxu0 0.0
  %359 = vmatpush2.msra.mxu0 0.0
  %360 = vmatprep.subr.mxu0 0.0
  %361 = vmatpush2.msra.mxu0 0.0
  %362 = vmatprep.subr.mxu0 0.0
  %363 = vmatpush2.msra.mxu0 0.0
  %364 = vmatprep.subr.mxu0 0.0
  %365 = vmatpush2.msra.mxu0 0.0
  %366 = vmatprep.subr.mxu0 0.0
  %367 = vmatpush2.msra.mxu0 0.0
  %368 = vmatprep.subr.mxu0 0.0
  %369 = vmatpush2.msra.mxu0 0.0
  %370 = vmatprep.mubr.f32.mxu0 0.0
  %371 = vmatmul.mubr.f32.gmra.mxu0 %v22
  %v372 = vpop.f32.mrf.mxu0
  %v373 = vadd.f32 0.0, %v372
  %v374 = vpop.f32.mrf.mxu0
  %375 = vmatprep.mubr.f32.mxu0 0.0
  %376 = vmatmul.mubr.f32.gmra.mxu0 %v25
  %v377 = vpop.f32.mrf.mxu0
  %v378 = vadd.f32 0.0, %v377
  %v379 = vpop.f32.mrf.mxu0
  %380 = vmatprep.mubr.f32.mxu0 0.0
  %381 = vmatmul.mubr.f32.gmra.mxu0 %v28
  %v382 = vpop.f32.mrf.mxu0
  %v383 = vadd.f32 0.0, %v382
  %v384 = vpop.f32.mrf.mxu0
  %385 = vmatprep.mubr.f32.mxu0 0.0
  %386 = vmatmul.mubr.f32.gmra.mxu0 %v31
  %v387 = vpop.f32.mrf.mxu0
  %v388 = vadd.f32 0.0, %v387
  %v389 = vpop.f32.mrf.mxu0
  %390 = vdwg.mxu0
  %391 = vst.msk [vmem:[#allocation2 + $0x60] sm:$0xff] %vm20, %v373
  %392 = vst.msk [vmem:[#allocation2 + $0x68] sm:$0xff] %vm20, %v378
  %393 = vst.msk [vmem:[#allocation2 + $0x70] sm:$0xff] %vm20, %v383
  %394 = vst.msk [vmem:[#allocation2 + $0x78] sm:$0xff] %vm20, %v388
  %v395 = vld [vmem:[%s2 + $0x40] sm:$0xff]
  %v396 = vld [vmem:[%s2 + $0x48] sm:$0xff]
  %397 = vmatprep.subr.mxu0 0.0
  %398 = vmatpush1.msra.mxu0 0.0
  %399 = vmatprep.subr.mxu0 0.0
  %400 = vmatpush1.msra.mxu0 0.0
  %401 = vmatprep.subr.mxu0 0.0
  %402 = vmatpush1.msra.mxu0 0.0
  %403 = vmatprep.subr.mxu0 0.0
  %404 = vmatpush1.msra.mxu0 0.0
  %405 = vmatprep.subr.mxu0 0.0
  %406 = vmatpush1.msra.mxu0 0.0
  %407 = vmatprep.subr.mxu0 0.0
  %408 = vmatpush1.msra.mxu0 0.0
  %409 = vmatprep.subr.mxu0 0.0
  %410 = vmatpush1.msra.mxu0 0.0
  %411 = vmatprep.subr.mxu0 0.0
  %412 = vmatpush1.msra.mxu0 0.0
  %413 = vmatprep.subr.mxu0 0.0
  %414 = vmatpush1.msra.mxu0 0.0
  %415 = vmatprep.subr.mxu0 0.0
  %416 = vmatpush1.msra.mxu0 0.0
  %417 = vmatprep.subr.mxu0 0.0
  %418 = vmatpush1.msra.mxu0 0.0
  %419 = vmatprep.subr.mxu0 0.0
  %420 = vmatpush1.msra.mxu0 0.0
  %421 = vmatprep.subr.mxu0 0.0
  %422 = vmatpush1.msra.mxu0 0.0
  %423 = vmatprep.subr.mxu0 0.0
  %424 = vmatpush1.msra.mxu0 0.0
  %425 = vmatprep.subr.mxu0 0.0
  %426 = vmatpush1.msra.mxu0 %v396
  %427 = vmatprep.subr.mxu0 0.0
  %428 = vmatpush1.msra.mxu0 %v395
  %429 = vmatprep.subr.mxu0 0.0
  %430 = vmatpush2.msra.mxu0 0.0
  %431 = vmatprep.subr.mxu0 0.0
  %432 = vmatpush2.msra.mxu0 0.0
  %433 = vmatprep.subr.mxu0 0.0
  %434 = vmatpush2.msra.mxu0 0.0
  %435 = vmatprep.subr.mxu0 0.0
  %436 = vmatpush2.msra.mxu0 0.0
  %437 = vmatprep.subr.mxu0 0.0
  %438 = vmatpush2.msra.mxu0 0.0
  %439 = vmatprep.subr.mxu0 0.0
  %440 = vmatpush2.msra.mxu0 0.0
  %441 = vmatprep.subr.mxu0 0.0
  %442 = vmatpush2.msra.mxu0 0.0
  %443 = vmatprep.subr.mxu0 0.0
  %444 = vmatpush2.msra.mxu0 0.0
  %445 = vmatprep.subr.mxu0 0.0
  %446 = vmatpush2.msra.mxu0 0.0
  %447 = vmatprep.subr.mxu0 0.0
  %448 = vmatpush2.msra.mxu0 0.0
  %449 = vmatprep.subr.mxu0 0.0
  %450 = vmatpush2.msra.mxu0 0.0
  %451 = vmatprep.subr.mxu0 0.0
  %452 = vmatpush2.msra.mxu0 0.0
  %453 = vmatprep.subr.mxu0 0.0
  %454 = vmatpush2.msra.mxu0 0.0
  %455 = vmatprep.subr.mxu0 0.0
  %456 = vmatpush2.msra.mxu0 0.0
  %457 = vmatprep.subr.mxu0 0.0
  %458 = vmatpush2.msra.mxu0 0.0
  %459 = vmatprep.subr.mxu0 0.0
  %460 = vmatpush2.msra.mxu0 0.0
  %461 = vmatprep.mubr.f32.mxu0 0.0
  %462 = vmatmul.mubr.f32.gmra.mxu0 %v22
  %v463 = vpop.f32.mrf.mxu0
  %v464 = vadd.f32 0.0, %v463
  %v465 = vpop.f32.mrf.mxu0
  %466 = vmatprep.mubr.f32.mxu0 0.0
  %467 = vmatmul.mubr.f32.gmra.mxu0 %v25
  %v468 = vpop.f32.mrf.mxu0
  %v469 = vadd.f32 0.0, %v468
  %v470 = vpop.f32.mrf.mxu0
  %471 = vmatprep.mubr.f32.mxu0 0.0
  %472 = vmatmul.mubr.f32.gmra.mxu0 %v28
  %v473 = vpop.f32.mrf.mxu0
  %v474 = vadd.f32 0.0, %v473
  %v475 = vpop.f32.mrf.mxu0
  %476 = vmatprep.mubr.f32.mxu0 0.0
  %477 = vmatmul.mubr.f32.gmra.mxu0 %v31
  %v478 = vpop.f32.mrf.mxu0
  %v479 = vadd.f32 0.0, %v478
  %v480 = vpop.f32.mrf.mxu0
  %481 = vdwg.mxu0
  %482 = vst.msk [vmem:[#allocation2 + $0x80] sm:$0xff] %vm20, %v464
  %483 = vst.msk [vmem:[#allocation2 + $0x88] sm:$0xff] %vm20, %v469
  %484 = vst.msk [vmem:[#allocation2 + $0x90] sm:$0xff] %vm20, %v474
  %485 = vst.msk [vmem:[#allocation2 + $0x98] sm:$0xff] %vm20, %v479
  %v486 = vld [vmem:[%s2 + $0x50] sm:$0xff]
  %v487 = vld [vmem:[%s2 + $0x58] sm:$0xff]
  %488 = vmatprep.subr.mxu0 0.0
  %489 = vmatpush1.msra.mxu0 0.0
  %490 = vmatprep.subr.mxu0 0.0
  %491 = vmatpush1.msra.mxu0 0.0
  %492 = vmatprep.subr.mxu0 0.0
  %493 = vmatpush1.msra.mxu0 0.0
  %494 = vmatprep.subr.mxu0 0.0
  %495 = vmatpush1.msra.mxu0 0.0
  %496 = vmatprep.subr.mxu0 0.0
  %497 = vmatpush1.msra.mxu0 0.0
  %498 = vmatprep.subr.mxu0 0.0
  %499 = vmatpush1.msra.mxu0 0.0
  %500 = vmatprep.subr.mxu0 0.0
  %501 = vmatpush1.msra.mxu0 0.0
  %502 = vmatprep.subr.mxu0 0.0
  %503 = vmatpush1.msra.mxu0 0.0
  %504 = vmatprep.subr.mxu0 0.0
  %505 = vmatpush1.msra.mxu0 0.0
  %506 = vmatprep.subr.mxu0 0.0
  %507 = vmatpush1.msra.mxu0 0.0
  %508 = vmatprep.subr.mxu0 0.0
  %509 = vmatpush1.msra.mxu0 0.0
  %510 = vmatprep.subr.mxu0 0.0
  %511 = vmatpush1.msra.mxu0 0.0
  %512 = vmatprep.subr.mxu0 0.0
  %513 = vmatpush1.msra.mxu0 0.0
  %514 = vmatprep.subr.mxu0 0.0
  %515 = vmatpush1.msra.mxu0 0.0
  %516 = vmatprep.subr.mxu0 0.0
  %517 = vmatpush1.msra.mxu0 %v487
  %518 = vmatprep.subr.mxu0 0.0
  %519 = vmatpush1.msra.mxu0 %v486
  %520 = vmatprep.subr.mxu0 0.0
  %521 = vmatpush2.msra.mxu0 0.0
  %522 = vmatprep.subr.mxu0 0.0
  %523 = vmatpush2.msra.mxu0 0.0
  %524 = vmatprep.subr.mxu0 0.0
  %525 = vmatpush2.msra.mxu0 0.0
  %526 = vmatprep.subr.mxu0 0.0
  %527 = vmatpush2.msra.mxu0 0.0
  %528 = vmatprep.subr.mxu0 0.0
  %529 = vmatpush2.msra.mxu0 0.0
  %530 = vmatprep.subr.mxu0 0.0
  %531 = vmatpush2.msra.mxu0 0.0
  %532 = vmatprep.subr.mxu0 0.0
  %533 = vmatpush2.msra.mxu0 0.0
  %534 = vmatprep.subr.mxu0 0.0
  %535 = vmatpush2.msra.mxu0 0.0
  %536 = vmatprep.subr.mxu0 0.0
  %537 = vmatpush2.msra.mxu0 0.0
  %538 = vmatprep.subr.mxu0 0.0
  %539 = vmatpush2.msra.mxu0 0.0
  %540 = vmatprep.subr.mxu0 0.0
  %541 = vmatpush2.msra.mxu0 0.0
  %542 = vmatprep.subr.mxu0 0.0
  %543 = vmatpush2.msra.mxu0 0.0
  %544 = vmatprep.subr.mxu0 0.0
  %545 = vmatpush2.msra.mxu0 0.0
  %546 = vmatprep.subr.mxu0 0.0
  %547 = vmatpush2.msra.mxu0 0.0
  %548 = vmatprep.subr.mxu0 0.0
  %549 = vmatpush2.msra.mxu0 0.0
  %550 = vmatprep.subr.mxu0 0.0
  %551 = vmatpush2.msra.mxu0 0.0
  %552 = vmatprep.mubr.f32.mxu0 0.0
  %553 = vmatmul.mubr.f32.gmra.mxu0 %v22
  %v554 = vpop.f32.mrf.mxu0
  %v555 = vadd.f32 0.0, %v554
  %v556 = vpop.f32.mrf.mxu0
  %557 = vmatprep.mubr.f32.mxu0 0.0
  %558 = vmatmul.mubr.f32.gmra.mxu0 %v25
  %v559 = vpop.f32.mrf.mxu0
  %v560 = vadd.f32 0.0, %v559
  %v561 = vpop.f32.mrf.mxu0
  %562 = vmatprep.mubr.f32.mxu0 0.0
  %563 = vmatmul.mubr.f32.gmra.mxu0 %v28
  %v564 = vpop.f32.mrf.mxu0
  %v565 = vadd.f32 0.0, %v564
  %v566 = vpop.f32.mrf.mxu0
  %567 = vmatprep.mubr.f32.mxu0 0.0
  %568 = vmatmul.mubr.f32.gmra.mxu0 %v31
  %v569 = vpop.f32.mrf.mxu0
  %v570 = vadd.f32 0.0, %v569
  %v571 = vpop.f32.mrf.mxu0
  %572 = vdwg.mxu0
  %573 = vst.msk [vmem:[#allocation2 + $0xa0] sm:$0xff] %vm20, %v555
  %574 = vst.msk [vmem:[#allocation2 + $0xa8] sm:$0xff] %vm20, %v560
  %575 = vst.msk [vmem:[#allocation2 + $0xb0] sm:$0xff] %vm20, %v565
  %576 = vst.msk [vmem:[#allocation2 + $0xb8] sm:$0xff] %vm20, %v570
  %v577 = vld [vmem:[%s2 + $0x60] sm:$0xff]
  %v578 = vld [vmem:[%s2 + $0x68] sm:$0xff]
  %579 = vmatprep.subr.mxu0 0.0
  %580 = vmatpush1.msra.mxu0 0.0
  %581 = vmatprep.subr.mxu0 0.0
  %582 = vmatpush1.msra.mxu0 0.0
  %583 = vmatprep.subr.mxu0 0.0
  %584 = vmatpush1.msra.mxu0 0.0
  %585 = vmatprep.subr.mxu0 0.0
  %586 = vmatpush1.msra.mxu0 0.0
  %587 = vmatprep.subr.mxu0 0.0
  %588 = vmatpush1.msra.mxu0 0.0
  %589 = vmatprep.subr.mxu0 0.0
  %590 = vmatpush1.msra.mxu0 0.0
  %591 = vmatprep.subr.mxu0 0.0
  %592 = vmatpush1.msra.mxu0 0.0
  %593 = vmatprep.subr.mxu0 0.0
  %594 = vmatpush1.msra.mxu0 0.0
  %595 = vmatprep.subr.mxu0 0.0
  %596 = vmatpush1.msra.mxu0 0.0
  %597 = vmatprep.subr.mxu0 0.0
  %598 = vmatpush1.msra.mxu0 0.0
  %599 = vmatprep.subr.mxu0 0.0
  %600 = vmatpush1.msra.mxu0 0.0
  %601 = vmatprep.subr.mxu0 0.0
  %602 = vmatpush1.msra.mxu0 0.0
  %603 = vmatprep.subr.mxu0 0.0
  %604 = vmatpush1.msra.mxu0 0.0
  %605 = vmatprep.subr.mxu0 0.0
  %606 = vmatpush1.msra.mxu0 0.0
  %607 = vmatprep.subr.mxu0 0.0
  %608 = vmatpush1.msra.mxu0 %v578
  %609 = vmatprep.subr.mxu0 0.0
  %610 = vmatpush1.msra.mxu0 %v577
  %611 = vmatprep.subr.mxu0 0.0
  %612 = vmatpush2.msra.mxu0 0.0
  %613 = vmatprep.subr.mxu0 0.0
  %614 = vmatpush2.msra.mxu0 0.0
  %615 = vmatprep.subr.mxu0 0.0
  %616 = vmatpush2.msra.mxu0 0.0
  %617 = vmatprep.subr.mxu0 0.0
  %618 = vmatpush2.msra.mxu0 0.0
  %619 = vmatprep.subr.mxu0 0.0
  %620 = vmatpush2.msra.mxu0 0.0
  %621 = vmatprep.subr.mxu0 0.0
  %622 = vmatpush2.msra.mxu0 0.0
  %623 = vmatprep.subr.mxu0 0.0
  %624 = vmatpush2.msra.mxu0 0.0
  %625 = vmatprep.subr.mxu0 0.0
  %626 = vmatpush2.msra.mxu0 0.0
  %627 = vmatprep.subr.mxu0 0.0
  %628 = vmatpush2.msra.mxu0 0.0
  %629 = vmatprep.subr.mxu0 0.0
  %630 = vmatpush2.msra.mxu0 0.0
  %631 = vmatprep.subr.mxu0 0.0
  %632 = vmatpush2.msra.mxu0 0.0
  %633 = vmatprep.subr.mxu0 0.0
  %634 = vmatpush2.msra.mxu0 0.0
  %635 = vmatprep.subr.mxu0 0.0
  %636 = vmatpush2.msra.mxu0 0.0
  %637 = vmatprep.subr.mxu0 0.0
  %638 = vmatpush2.msra.mxu0 0.0
  %639 = vmatprep.subr.mxu0 0.0
  %640 = vmatpush2.msra.mxu0 0.0
  %641 = vmatprep.subr.mxu0 0.0
  %642 = vmatpush2.msra.mxu0 0.0
  %643 = vmatprep.mubr.f32.mxu0 0.0
  %644 = vmatmul.mubr.f32.gmra.mxu0 %v22
  %v645 = vpop.f32.mrf.mxu0
  %v646 = vadd.f32 0.0, %v645
  %v647 = vpop.f32.mrf.mxu0
  %648 = vmatprep.mubr.f32.mxu0 0.0
  %649 = vmatmul.mubr.f32.gmra.mxu0 %v25
  %v650 = vpop.f32.mrf.mxu0
  %v651 = vadd.f32 0.0, %v650
  %v652 = vpop.f32.mrf.mxu0
  %653 = vmatprep.mubr.f32.mxu0 0.0
  %654 = vmatmul.mubr.f32.gmra.mxu0 %v28
  %v655 = vpop.f32.mrf.mxu0
  %v656 = vadd.f32 0.0, %v655
  %v657 = vpop.f32.mrf.mxu0
  %658 = vmatprep.mubr.f32.mxu0 0.0
  %659 = vmatmul.mubr.f32.gmra.mxu0 %v31
  %v660 = vpop.f32.mrf.mxu0
  %v661 = vadd.f32 0.0, %v660
  %v662 = vpop.f32.mrf.mxu0
  %663 = vdwg.mxu0
  %664 = vst.msk [vmem:[#allocation2 + $0xc0] sm:$0xff] %vm20, %v646
  %665 = vst.msk [vmem:[#allocation2 + $0xc8] sm:$0xff] %vm20, %v651
  %666 = vst.msk [vmem:[#allocation2 + $0xd0] sm:$0xff] %vm20, %v656
  %667 = vst.msk [vmem:[#allocation2 + $0xd8] sm:$0xff] %vm20, %v661
  %v668 = vld [vmem:[%s2 + $0x70] sm:$0xff]
  %v669 = vld [vmem:[%s2 + $0x78] sm:$0xff]
  %670 = vmatprep.subr.mxu0 0.0
  %671 = vmatpush1.msra.mxu0 0.0
  %672 = vmatprep.subr.mxu0 0.0
  %673 = vmatpush1.msra.mxu0 0.0
  %674 = vmatprep.subr.mxu0 0.0
  %675 = vmatpush1.msra.mxu0 0.0
  %676 = vmatprep.subr.mxu0 0.0
  %677 = vmatpush1.msra.mxu0 0.0
  %678 = vmatprep.subr.mxu0 0.0
  %679 = vmatpush1.msra.mxu0 0.0
  %680 = vmatprep.subr.mxu0 0.0
  %681 = vmatpush1.msra.mxu0 0.0
  %682 = vmatprep.subr.mxu0 0.0
  %683 = vmatpush1.msra.mxu0 0.0
  %684 = vmatprep.subr.mxu0 0.0
  %685 = vmatpush1.msra.mxu0 0.0
  %686 = vmatprep.subr.mxu0 0.0
  %687 = vmatpush1.msra.mxu0 0.0
  %688 = vmatprep.subr.mxu0 0.0
  %689 = vmatpush1.msra.mxu0 0.0
  %690 = vmatprep.subr.mxu0 0.0
  %691 = vmatpush1.msra.mxu0 0.0
  %692 = vmatprep.subr.mxu0 0.0
  %693 = vmatpush1.msra.mxu0 0.0
  %694 = vmatprep.subr.mxu0 0.0
  %695 = vmatpush1.msra.mxu0 0.0
  %696 = vmatprep.subr.mxu0 0.0
  %697 = vmatpush1.msra.mxu0 0.0
  %698 = vmatprep.subr.mxu0 0.0
  %699 = vmatpush1.msra.mxu0 %v669
  %700 = vmatprep.subr.mxu0 0.0
  %701 = vmatpush1.msra.mxu0 %v668
  %702 = vmatprep.subr.mxu0 0.0
  %703 = vmatpush2.msra.mxu0 0.0
  %704 = vmatprep.subr.mxu0 0.0
  %705 = vmatpush2.msra.mxu0 0.0
  %706 = vmatprep.subr.mxu0 0.0
  %707 = vmatpush2.msra.mxu0 0.0
  %708 = vmatprep.subr.mxu0 0.0
  %709 = vmatpush2.msra.mxu0 0.0
  %710 = vmatprep.subr.mxu0 0.0
  %711 = vmatpush2.msra.mxu0 0.0
  %712 = vmatprep.subr.mxu0 0.0
  %713 = vmatpush2.msra.mxu0 0.0
  %714 = vmatprep.subr.mxu0 0.0
  %715 = vmatpush2.msra.mxu0 0.0
  %716 = vmatprep.subr.mxu0 0.0
  %717 = vmatpush2.msra.mxu0 0.0
  %718 = vmatprep.subr.mxu0 0.0
  %719 = vmatpush2.msra.mxu0 0.0
  %720 = vmatprep.subr.mxu0 0.0
  %721 = vmatpush2.msra.mxu0 0.0
  %722 = vmatprep.subr.mxu0 0.0
  %723 = vmatpush2.msra.mxu0 0.0
  %724 = vmatprep.subr.mxu0 0.0
  %725 = vmatpush2.msra.mxu0 0.0
  %726 = vmatprep.subr.mxu0 0.0
  %727 = vmatpush2.msra.mxu0 0.0
  %728 = vmatprep.subr.mxu0 0.0
  %729 = vmatpush2.msra.mxu0 0.0
  %730 = vmatprep.subr.mxu0 0.0
  %731 = vmatpush2.msra.mxu0 0.0
  %732 = vmatprep.subr.mxu0 0.0
  %733 = vmatpush2.msra.mxu0 0.0
  %734 = vmatprep.mubr.f32.mxu0 0.0
  %735 = vmatmul.mubr.f32.gmra.mxu0 %v22
  %v736 = vpop.f32.mrf.mxu0
  %v737 = vadd.f32 0.0, %v736
  %v738 = vpop.f32.mrf.mxu0
  %739 = vmatprep.mubr.f32.mxu0 0.0
  %740 = vmatmul.mubr.f32.gmra.mxu0 %v25
  %v741 = vpop.f32.mrf.mxu0
  %v742 = vadd.f32 0.0, %v741
  %v743 = vpop.f32.mrf.mxu0
  %744 = vmatprep.mubr.f32.mxu0 0.0
  %745 = vmatmul.mubr.f32.gmra.mxu0 %v28
  %v746 = vpop.f32.mrf.mxu0
  %v747 = vadd.f32 0.0, %v746
  %v748 = vpop.f32.mrf.mxu0
  %749 = vmatprep.mubr.f32.mxu0 0.0
  %750 = vmatmul.mubr.f32.gmra.mxu0 %v31
  %v751 = vpop.f32.mrf.mxu0
  %v752 = vadd.f32 0.0, %v751
  %v753 = vpop.f32.mrf.mxu0
  %754 = vdwg.mxu0
  %755 = vst.msk [vmem:[#allocation2 + $0xe0] sm:$0xff] %vm20, %v737
  %756 = vst.msk [vmem:[#allocation2 + $0xe8] sm:$0xff] %vm20, %v742
  %757 = vst.msk [vmem:[#allocation2 + $0xf0] sm:$0xff] %vm20, %v747
  %758 = vst.msk [vmem:[#allocation2 + $0xf8] sm:$0xff] %vm20, %v752
  %v759 = vld [vmem:[#allocation2] sm:$0xff]
  %v760 = vld [vmem:[#allocation2 + $0x8] sm:$0xff]
  %v761 = vld [vmem:[#allocation2 + $0x10] sm:$0xff]
  %v762 = vld [vmem:[#allocation2 + $0x18] sm:$0xff]
  %v763 = vld [vmem:[#allocation2 + $0x20] sm:$0xff]
  %v764 = vld [vmem:[#allocation2 + $0x28] sm:$0xff]
  %v765 = vld [vmem:[#allocation2 + $0x30] sm:$0xff]
  %v766 = vld [vmem:[#allocation2 + $0x38] sm:$0xff]
  %v767 = vld [vmem:[#allocation2 + $0x40] sm:$0xff]
  %v768 = vld [vmem:[#allocation2 + $0x48] sm:$0xff]
  %v769 = vld [vmem:[#allocation2 + $0x50] sm:$0xff]
  %v770 = vld [vmem:[#allocation2 + $0x58] sm:$0xff]
  %v771 = vld [vmem:[#allocation2 + $0x60] sm:$0xff]
  %v772 = vld [vmem:[#allocation2 + $0x68] sm:$0xff]
  %v773 = vld [vmem:[#allocation2 + $0x70] sm:$0xff]
  %v774 = vld [vmem:[#allocation2 + $0x78] sm:$0xff]
  %v775 = vld [vmem:[#allocation2 + $0x80] sm:$0xff]
  %v776 = vld [vmem:[#allocation2 + $0x88] sm:$0xff]
  %v777 = vld [vmem:[#allocation2 + $0x90] sm:$0xff]
  %v778 = vld [vmem:[#allocation2 + $0x98] sm:$0xff]
  %v779 = vld [vmem:[#allocation2 + $0xa0] sm:$0xff]
  %v780 = vld [vmem:[#allocation2 + $0xa8] sm:$0xff]
  %v781 = vld [vmem:[#allocation2 + $0xb0] sm:$0xff]
  %v782 = vld [vmem:[#allocation2 + $0xb8] sm:$0xff]
  %v783 = vld [vmem:[#allocation2 + $0xc0] sm:$0xff]
  %v784 = vld [vmem:[#allocation2 + $0xc8] sm:$0xff]
  %v785 = vld [vmem:[#allocation2 + $0xd0] sm:$0xff]
  %v786 = vld [vmem:[#allocation2 + $0xd8] sm:$0xff]
  %v787 = vld [vmem:[#allocation2 + $0xe0] sm:$0xff]
  %v788 = vld [vmem:[#allocation2 + $0xe8] sm:$0xff]
  %v789 = vld [vmem:[#allocation2 + $0xf0] sm:$0xff]
  %v790 = vld [vmem:[#allocation2 + $0xf8] sm:$0xff]
  %v791 = vld [vmem:[%s1] sm:$0xff]
  %v792 = vld [vmem:[%s1 + $0x8] sm:$0xff]
  %v794 = vsel %vm20, %v759, 0
  %v797 = vsel %vm20, %v760, 0
  %v800 = vsel %vm20, %v761, 0
  %v803 = vsel %vm20, %v762, 0
  %v806 = vsel %vm20, %v763, 0
  %v809 = vsel %vm20, %v764, 0
  %v812 = vsel %vm20, %v765, 0
  %v815 = vsel %vm20, %v766, 0
  %v818 = vsel %vm20, %v767, 0
  %v821 = vsel %vm20, %v768, 0
  %v824 = vsel %vm20, %v769, 0
  %v827 = vsel %vm20, %v770, 0
  %v830 = vsel %vm20, %v771, 0
  %v833 = vsel %vm20, %v772, 0
  %v836 = vsel %vm20, %v773, 0
  %v839 = vsel %vm20, %v774, 0
  %v842 = vsel %vm20, %v775, 0
  %v845 = vsel %vm20, %v776, 0
  %v848 = vsel %vm20, %v777, 0
  %v851 = vsel %vm20, %v778, 0
  %v854 = vsel %vm20, %v779, 0
  %v857 = vsel %vm20, %v780, 0
  %v860 = vsel %vm20, %v781, 0
  %v863 = vsel %vm20, %v782, 0
  %v866 = vsel %vm20, %v783, 0
  %v869 = vsel %vm20, %v784, 0
  %v872 = vsel %vm20, %v785, 0
  %v875 = vsel %vm20, %v786, 0
  %v878 = vsel %vm20, %v787, 0
  %v881 = vsel %vm20, %v788, 0
  %v884 = vsel %vm20, %v789, 0
  %v887 = vsel %vm20, %v790, 0
  %889 = vmatprep.subr.mxu0 0.0
  %890 = vmatpush1.msra.mxu0 0.0
  %891 = vmatprep.subr.mxu0 0.0
  %892 = vmatpush1.msra.mxu0 0.0
  %893 = vmatprep.subr.mxu0 0.0
  %894 = vmatpush1.msra.mxu0 0.0
  %895 = vmatprep.subr.mxu0 0.0
  %896 = vmatpush1.msra.mxu0 0.0
  %897 = vmatprep.subr.mxu0 0.0
  %898 = vmatpush1.msra.mxu0 0.0
  %899 = vmatprep.subr.mxu0 0.0
  %900 = vmatpush1.msra.mxu0 0.0
  %901 = vmatprep.subr.mxu0 0.0
  %902 = vmatpush1.msra.mxu0 0.0
  %903 = vmatprep.subr.mxu0 0.0
  %904 = vmatpush1.msra.mxu0 0.0
  %905 = vmatprep.subr.mxu0 0.0
  %906 = vmatpush1.msra.mxu0 0.0
  %907 = vmatprep.subr.mxu0 0.0
  %908 = vmatpush1.msra.mxu0 0.0
  %909 = vmatprep.subr.mxu0 0.0
  %910 = vmatpush1.msra.mxu0 0.0
  %911 = vmatprep.subr.mxu0 0.0
  %912 = vmatpush1.msra.mxu0 0.0
  %913 = vmatprep.subr.mxu0 0.0
  %914 = vmatpush1.msra.mxu0 0.0
  %915 = vmatprep.subr.mxu0 0.0
  %916 = vmatpush1.msra.mxu0 0.0
  %917 = vmatprep.subr.mxu0 0.0
  %918 = vmatpush1.msra.mxu0 %v792
  %919 = vmatprep.subr.mxu0 0.0
  %920 = vmatpush1.msra.mxu0 %v791
  %921 = vmatprep.subr.mxu0 0.0
  %922 = vmatpush2.msra.mxu0 0.0
  %923 = vmatprep.subr.mxu0 0.0
  %924 = vmatpush2.msra.mxu0 0.0
  %925 = vmatprep.subr.mxu0 0.0
  %926 = vmatpush2.msra.mxu0 0.0
  %927 = vmatprep.subr.mxu0 0.0
  %928 = vmatpush2.msra.mxu0 0.0
  %929 = vmatprep.subr.mxu0 0.0
  %930 = vmatpush2.msra.mxu0 0.0
  %931 = vmatprep.subr.mxu0 0.0
  %932 = vmatpush2.msra.mxu0 0.0
  %933 = vmatprep.subr.mxu0 0.0
  %934 = vmatpush2.msra.mxu0 0.0
  %935 = vmatprep.subr.mxu0 0.0
  %936 = vmatpush2.msra.mxu0 0.0
  %937 = vmatprep.subr.mxu0 0.0
  %938 = vmatpush2.msra.mxu0 0.0
  %939 = vmatprep.subr.mxu0 0.0
  %940 = vmatpush2.msra.mxu0 0.0
  %941 = vmatprep.subr.mxu0 0.0
  %942 = vmatpush2.msra.mxu0 0.0
  %943 = vmatprep.subr.mxu0 0.0
  %944 = vmatpush2.msra.mxu0 0.0
  %945 = vmatprep.subr.mxu0 0.0
  %946 = vmatpush2.msra.mxu0 0.0
  %947 = vmatprep.subr.mxu0 0.0
  %948 = vmatpush2.msra.mxu0 0.0
  %949 = vmatprep.subr.mxu0 0.0
  %950 = vmatpush2.msra.mxu0 0.0
  %951 = vmatprep.subr.mxu0 0.0
  %952 = vmatpush2.msra.mxu0 0.0
  %953 = vmatprep.mubr.f32.mxu0 0.0
  %954 = vmatmul.mubr.f32.gmra.mxu0 %v794
  %v955 = vpop.f32.mrf.mxu0
  %v956 = vadd.f32 0.0, %v955
  %v957 = vpop.f32.mrf.mxu0
  %958 = vmatprep.mubr.f32.mxu0 0.0
  %959 = vmatmul.mubr.f32.gmra.mxu0 %v797
  %v960 = vpop.f32.mrf.mxu0
  %v961 = vadd.f32 0.0, %v960
  %v962 = vpop.f32.mrf.mxu0
  %963 = vmatprep.mubr.f32.mxu0 0.0
  %964 = vmatmul.mubr.f32.gmra.mxu0 %v800
  %v965 = vpop.f32.mrf.mxu0
  %v966 = vadd.f32 0.0, %v965
  %v967 = vpop.f32.mrf.mxu0
  %968 = vmatprep.mubr.f32.mxu0 0.0
  %969 = vmatmul.mubr.f32.gmra.mxu0 %v803
  %v970 = vpop.f32.mrf.mxu0
  %v971 = vadd.f32 0.0, %v970
  %v972 = vpop.f32.mrf.mxu0
  %973 = vmatprep.mubr.f32.mxu0 0.0
  %974 = vmatmul.mubr.f32.gmra.mxu0 %v806
  %v975 = vpop.f32.mrf.mxu0
  %v976 = vadd.f32 0.0, %v975
  %v977 = vpop.f32.mrf.mxu0
  %978 = vmatprep.mubr.f32.mxu0 0.0
  %979 = vmatmul.mubr.f32.gmra.mxu0 %v809
  %v980 = vpop.f32.mrf.mxu0
  %v981 = vadd.f32 0.0, %v980
  %v982 = vpop.f32.mrf.mxu0
  %983 = vmatprep.mubr.f32.mxu0 0.0
  %984 = vmatmul.mubr.f32.gmra.mxu0 %v812
  %v985 = vpop.f32.mrf.mxu0
  %v986 = vadd.f32 0.0, %v985
  %v987 = vpop.f32.mrf.mxu0
  %988 = vmatprep.mubr.f32.mxu0 0.0
  %989 = vmatmul.mubr.f32.gmra.mxu0 %v815
  %v990 = vpop.f32.mrf.mxu0
  %v991 = vadd.f32 0.0, %v990
  %v992 = vpop.f32.mrf.mxu0
  %993 = vmatprep.mubr.f32.mxu0 0.0
  %994 = vmatmul.mubr.f32.gmra.mxu0 %v818
  %v995 = vpop.f32.mrf.mxu0
  %v996 = vadd.f32 0.0, %v995
  %v997 = vpop.f32.mrf.mxu0
  %998 = vmatprep.mubr.f32.mxu0 0.0
  %999 = vmatmul.mubr.f32.gmra.mxu0 %v821
  %v1000 = vpop.f32.mrf.mxu0
  %v1001 = vadd.f32 0.0, %v1000
  %v1002 = vpop.f32.mrf.mxu0
  %1003 = vmatprep.mubr.f32.mxu0 0.0
  %1004 = vmatmul.mubr.f32.gmra.mxu0 %v824
  %v1005 = vpop.f32.mrf.mxu0
  %v1006 = vadd.f32 0.0, %v1005
  %v1007 = vpop.f32.mrf.mxu0
  %1008 = vmatprep.mubr.f32.mxu0 0.0
  %1009 = vmatmul.mubr.f32.gmra.mxu0 %v827
  %v1010 = vpop.f32.mrf.mxu0
  %v1011 = vadd.f32 0.0, %v1010
  %v1012 = vpop.f32.mrf.mxu0
  %1013 = vmatprep.mubr.f32.mxu0 0.0
  %1014 = vmatmul.mubr.f32.gmra.mxu0 %v830
  %v1015 = vpop.f32.mrf.mxu0
  %v1016 = vadd.f32 0.0, %v1015
  %v1017 = vpop.f32.mrf.mxu0
  %1018 = vmatprep.mubr.f32.mxu0 0.0
  %1019 = vmatmul.mubr.f32.gmra.mxu0 %v833
  %v1020 = vpop.f32.mrf.mxu0
  %v1021 = vadd.f32 0.0, %v1020
  %v1022 = vpop.f32.mrf.mxu0
  %1023 = vmatprep.mubr.f32.mxu0 0.0
  %1024 = vmatmul.mubr.f32.gmra.mxu0 %v836
  %v1025 = vpop.f32.mrf.mxu0
  %v1026 = vadd.f32 0.0, %v1025
  %v1027 = vpop.f32.mrf.mxu0
  %1028 = vmatprep.mubr.f32.mxu0 0.0
  %1029 = vmatmul.mubr.f32.gmra.mxu0 %v839
  %v1030 = vpop.f32.mrf.mxu0
  %v1031 = vadd.f32 0.0, %v1030
  %v1032 = vpop.f32.mrf.mxu0
  %1033 = vmatprep.mubr.f32.mxu0 0.0
  %1034 = vmatmul.mubr.f32.gmra.mxu0 %v842
  %v1035 = vpop.f32.mrf.mxu0
  %v1036 = vadd.f32 0.0, %v1035
  %v1037 = vpop.f32.mrf.mxu0
  %1038 = vmatprep.mubr.f32.mxu0 0.0
  %1039 = vmatmul.mubr.f32.gmra.mxu0 %v845
  %v1040 = vpop.f32.mrf.mxu0
  %v1041 = vadd.f32 0.0, %v1040
  %v1042 = vpop.f32.mrf.mxu0
  %1043 = vmatprep.mubr.f32.mxu0 0.0
  %1044 = vmatmul.mubr.f32.gmra.mxu0 %v848
  %v1045 = vpop.f32.mrf.mxu0
  %v1046 = vadd.f32 0.0, %v1045
  %v1047 = vpop.f32.mrf.mxu0
  %1048 = vmatprep.mubr.f32.mxu0 0.0
  %1049 = vmatmul.mubr.f32.gmra.mxu0 %v851
  %v1050 = vpop.f32.mrf.mxu0
  %v1051 = vadd.f32 0.0, %v1050
  %v1052 = vpop.f32.mrf.mxu0
  %1053 = vmatprep.mubr.f32.mxu0 0.0
  %1054 = vmatmul.mubr.f32.gmra.mxu0 %v854
  %v1055 = vpop.f32.mrf.mxu0
  %v1056 = vadd.f32 0.0, %v1055
  %v1057 = vpop.f32.mrf.mxu0
  %1058 = vmatprep.mubr.f32.mxu0 0.0
  %1059 = vmatmul.mubr.f32.gmra.mxu0 %v857
  %v1060 = vpop.f32.mrf.mxu0
  %v1061 = vadd.f32 0.0, %v1060
  %v1062 = vpop.f32.mrf.mxu0
  %1063 = vmatprep.mubr.f32.mxu0 0.0
  %1064 = vmatmul.mubr.f32.gmra.mxu0 %v860
  %v1065 = vpop.f32.mrf.mxu0
  %v1066 = vadd.f32 0.0, %v1065
  %v1067 = vpop.f32.mrf.mxu0
  %1068 = vmatprep.mubr.f32.mxu0 0.0
  %1069 = vmatmul.mubr.f32.gmra.mxu0 %v863
  %v1070 = vpop.f32.mrf.mxu0
  %v1071 = vadd.f32 0.0, %v1070
  %v1072 = vpop.f32.mrf.mxu0
  %1073 = vmatprep.mubr.f32.mxu0 0.0
  %1074 = vmatmul.mubr.f32.gmra.mxu0 %v866
  %v1075 = vpop.f32.mrf.mxu0
  %v1076 = vadd.f32 0.0, %v1075
  %v1077 = vpop.f32.mrf.mxu0
  %1078 = vmatprep.mubr.f32.mxu0 0.0
  %1079 = vmatmul.mubr.f32.gmra.mxu0 %v869
  %v1080 = vpop.f32.mrf.mxu0
  %v1081 = vadd.f32 0.0, %v1080
  %v1082 = vpop.f32.mrf.mxu0
  %1083 = vmatprep.mubr.f32.mxu0 0.0
  %1084 = vmatmul.mubr.f32.gmra.mxu0 %v872
  %v1085 = vpop.f32.mrf.mxu0
  %v1086 = vadd.f32 0.0, %v1085
  %v1087 = vpop.f32.mrf.mxu0
  %1088 = vmatprep.mubr.f32.mxu0 0.0
  %1089 = vmatmul.mubr.f32.gmra.mxu0 %v875
  %v1090 = vpop.f32.mrf.mxu0
  %v1091 = vadd.f32 0.0, %v1090
  %v1092 = vpop.f32.mrf.mxu0
  %1093 = vmatprep.mubr.f32.mxu0 0.0
  %1094 = vmatmul.mubr.f32.gmra.mxu0 %v878
  %v1095 = vpop.f32.mrf.mxu0
  %v1096 = vadd.f32 0.0, %v1095
  %v1097 = vpop.f32.mrf.mxu0
  %1098 = vmatprep.mubr.f32.mxu0 0.0
  %1099 = vmatmul.mubr.f32.gmra.mxu0 %v881
  %v1100 = vpop.f32.mrf.mxu0
  %v1101 = vadd.f32 0.0, %v1100
  %v1102 = vpop.f32.mrf.mxu0
  %1103 = vmatprep.mubr.f32.mxu0 0.0
  %1104 = vmatmul.mubr.f32.gmra.mxu0 %v884
  %v1105 = vpop.f32.mrf.mxu0
  %v1106 = vadd.f32 0.0, %v1105
  %v1107 = vpop.f32.mrf.mxu0
  %1108 = vmatprep.mubr.f32.mxu0 0.0
  %1109 = vmatmul.mubr.f32.gmra.mxu0 %v887
  %v1110 = vpop.f32.mrf.mxu0
  %v1111 = vadd.f32 0.0, %v1110
  %v1112 = vpop.f32.mrf.mxu0
  %1113 = vdwg.mxu0
  %vm1114 = vcmask 261120
  %1115 = vst.msk [vmem:[%s3] sm:$0xff] %vm1114, %v956
  %1116 = vst.msk [vmem:[%s3 + $0x8] sm:$0xff] %vm1114, %v961
  %1117 = vst.msk [vmem:[%s3 + $0x10] sm:$0xff] %vm1114, %v966
  %1118 = vst.msk [vmem:[%s3 + $0x18] sm:$0xff] %vm1114, %v971
  %1119 = vst.msk [vmem:[%s3 + $0x20] sm:$0xff] %vm1114, %v976
  %1120 = vst.msk [vmem:[%s3 + $0x28] sm:$0xff] %vm1114, %v981
  %1121 = vst.msk [vmem:[%s3 + $0x30] sm:$0xff] %vm1114, %v986
  %1122 = vst.msk [vmem:[%s3 + $0x38] sm:$0xff] %vm1114, %v991
  %1123 = vst.msk [vmem:[%s3 + $0x40] sm:$0xff] %vm1114, %v996
  %1124 = vst.msk [vmem:[%s3 + $0x48] sm:$0xff] %vm1114, %v1001
  %1125 = vst.msk [vmem:[%s3 + $0x50] sm:$0xff] %vm1114, %v1006
  %1126 = vst.msk [vmem:[%s3 + $0x58] sm:$0xff] %vm1114, %v1011
  %1127 = vst.msk [vmem:[%s3 + $0x60] sm:$0xff] %vm1114, %v1016
  %1128 = vst.msk [vmem:[%s3 + $0x68] sm:$0xff] %vm1114, %v1021
  %1129 = vst.msk [vmem:[%s3 + $0x70] sm:$0xff] %vm1114, %v1026
  %1130 = vst.msk [vmem:[%s3 + $0x78] sm:$0xff] %vm1114, %v1031
  %1131 = vst.msk [vmem:[%s3 + $0x80] sm:$0xff] %vm1114, %v1036
  %1132 = vst.msk [vmem:[%s3 + $0x88] sm:$0xff] %vm1114, %v1041
  %1133 = vst.msk [vmem:[%s3 + $0x90] sm:$0xff] %vm1114, %v1046
  %1134 = vst.msk [vmem:[%s3 + $0x98] sm:$0xff] %vm1114, %v1051
  %1135 = vst.msk [vmem:[%s3 + $0xa0] sm:$0xff] %vm1114, %v1056
  %1136 = vst.msk [vmem:[%s3 + $0xa8] sm:$0xff] %vm1114, %v1061
  %1137 = vst.msk [vmem:[%s3 + $0xb0] sm:$0xff] %vm1114, %v1066
  %1138 = vst.msk [vmem:[%s3 + $0xb8] sm:$0xff] %vm1114, %v1071
  %1139 = vst.msk [vmem:[%s3 + $0xc0] sm:$0xff] %vm1114, %v1076
  %1140 = vst.msk [vmem:[%s3 + $0xc8] sm:$0xff] %vm1114, %v1081
  %1141 = vst.msk [vmem:[%s3 + $0xd0] sm:$0xff] %vm1114, %v1086
  %1142 = vst.msk [vmem:[%s3 + $0xd8] sm:$0xff] %vm1114, %v1091
  %1143 = vst.msk [vmem:[%s3 + $0xe0] sm:$0xff] %vm1114, %v1096
  %1144 = vst.msk [vmem:[%s3 + $0xe8] sm:$0xff] %vm1114, %v1101
  %1145 = vst.msk [vmem:[%s3 + $0xf0] sm:$0xff] %vm1114, %v1106
  %1146 = vst.msk [vmem:[%s3 + $0xf8] sm:$0xff] %vm1114, %v1111
  // Predicated region
  $region14: #{tpu_custom_call.1} parent=0 // pred_check
    _
  $region15: #{tpu_custom_call.1} parent=0 // pred_check_branch
    %1148 = sbr.rel (0) target = $region17
  $region16: #{tpu_custom_call.1} parent=0 // pred_region
    _
  $region17: #{tpu_custom_call.1} parent=0 // pred_fallthru
    _
  // Predicated region
  $region18: #{tpu_custom_call.1} parent=0 // pred_check
    _
  $region19: #{tpu_custom_call.1} parent=0 // pred_check_branch
    %1150 = sbr.rel (0) target = $region21
  $region20: #{tpu_custom_call.1} parent=0 // pred_region
    _
  $region21: #{tpu_custom_call.1} parent=0 // pred_fallthru
    _

</llo_original>
